<compile_context>
chip_gen: v5e
topology: v5e:2x2
jax: 0.10.0
libtpu: 0.0.40
codegen_flags: <defaults>
</compile_context>

<pallas_src>
import math
from functools import partial

import jax
import jax.numpy as jnp
import numpy as np
from jax.experimental import pallas as pl
from jax.experimental.pallas import tpu as pltpu


# Set to jnp.bfloat16 on v6e/v7x for the fast MXU path (loosen the test tolerance to
# ~1e-2 if you do).  Default f32 keeps parity with the f32 PyTorch reference.
MXU_DTYPE = jnp.float32


# ----------------------------- kernel helpers ------------------------------


def _gelu_exact(v):
    # matches torch.nn.functional.gelu default (erf form)
    return 0.5 * v * (1.0 + jax.lax.erf(v * (1.0 / math.sqrt(2.0))))


def _shift_flat(y, s):
    """z[:, f] = y[:, f + s], zero-filled past the flat boundary (lane shift)."""
    if s == 0:
        return y
    C, HW = y.shape
    if s > 0:
        return jnp.concatenate([y[:, s:], jnp.zeros((C, s), y.dtype)], axis=1)
    return jnp.concatenate([jnp.zeros((C, -s), y.dtype), y[:, :HW + s]], axis=1)


def _affn_kernel(xm_ref, mwl_ref, mwr_ref,
                 w_proj_ref, b_proj_ref, w_dw_ref, b_dw_ref,
                 w_out_ref, b_out_ref, o_ref, *, H, W):
    HW = H * W
    Hh = w_out_ref.shape[1]            # hidden_features
    C3 = 3 * Hh

    # ---- fused project_in (both chunks) + project_maskin: one MXU matmul ----
    xm = xm_ref[0].astype(MXU_DTYPE)                         # (2*dim, HW), lane-dense
    z = jnp.dot(w_proj_ref[...].astype(MXU_DTYPE), xm,
                preferred_element_type=jnp.float32)
    z = z + b_proj_ref[...]                                  # (3*Hh, HW) f32

    # ---- fused depthwise 3x3 conv over all 3*Hh channels (registerized) ----
    # Weight layout: w_dw[:, (dh+1)*3 + (dw+1)].
    w_dw = w_dw_ref[...]                                     # (3*Hh, 9) -- read once
    mask_wl = mwl_ref[...]                                   # (1, HW): valid for dw=-1
    mask_wr = mwr_ref[...]                                   # (1, HW): valid for dw=+1

    # Horizontal taps once (W-edge masked); per-channel weights commute with the
    # vertical lane shift, so only 2 more shifts (by +-W) finish all 9 taps.
    h_m1 = _shift_flat(z, -1) * mask_wl                      # reads (h, w-1)
    h_p1 = _shift_flat(z, +1) * mask_wr                      # reads (h, w+1)

    band_m1 = w_dw[:, 0:1] * h_m1 + w_dw[:, 1:2] * z + w_dw[:, 2:3] * h_p1   # dh=-1
    band_0  = w_dw[:, 3:4] * h_m1 + w_dw[:, 4:5] * z + w_dw[:, 5:6] * h_p1   # dh= 0
    band_p1 = w_dw[:, 6:7] * h_m1 + w_dw[:, 7:8] * z + w_dw[:, 8:9] * h_p1   # dh=+1

    acc = (band_0
           + _shift_flat(band_m1, -W)                        # zero-fill -> h=0 edge
           + _shift_flat(band_p1, W)                          # zero-fill -> h=H-1 edge
           + b_dw_ref[...])                                   # (3*Hh, HW)

    # ---- gating: x = gelu(x1) * (gelu(mask) * x2) ----
    x1 = acc[0:Hh, :]
    x2 = acc[Hh:2 * Hh, :]
    md = acc[2 * Hh:C3, :]
    gated = _gelu_exact(x1) * (_gelu_exact(md) * x2)         # (Hh, HW)

    # ---- project_out: 1x1 conv == matmul; lane-dense (HW-wide) writeback ----
    out = jnp.dot(w_out_ref[...].astype(MXU_DTYPE), gated.astype(MXU_DTYPE),
                  preferred_element_type=jnp.float32) + b_out_ref[...]
    o_ref[...] = out.reshape(o_ref.shape).astype(o_ref.dtype)


# ------------------------------ python wrapper ------------------------------


def attention_feedforward(x_nchw, mask_nchw, params):
    """x_nchw, mask_nchw: (N, dim, H, W) float32; params: kernel-layout weights."""
    N, D, H, W = x_nchw.shape
    HW = H * W
    p = params

    # stay NCHW; flatten spatial so lanes = H*W, stack x/mask channels so the fused
    # projection is a single matmul.
    xm = jnp.concatenate([x_nchw.reshape(N, D, HW),
                          mask_nchw.reshape(N, D, HW)], axis=1)     # (N, 2*dim, HW)

    # W-boundary validity masks for the shifted depthwise-conv taps (lane masks).
    col = jnp.tile(jnp.arange(W, dtype=jnp.int32), H)
    mask_wl = (col >= 1).astype(jnp.float32).reshape(1, HW)         # dw = -1 valid
    mask_wr = (col <= W - 2).astype(jnp.float32).reshape(1, HW)     # dw = +1 valid

    def full_spec(arr):
        nd = arr.ndim
        return pl.BlockSpec(arr.shape, lambda b, _nd=nd: (0,) * _nd)

    weights = (p["w_proj"], p["b_proj"], p["w_dw"], p["b_dw"], p["w_out"], p["b_out"])

    in_specs = ([pl.BlockSpec((1, 2 * D, HW), lambda b: (b, 0, 0)),
                 full_spec(mask_wl), full_spec(mask_wr)]
                + [full_spec(w) for w in weights])

    out = pl.pallas_call(
        partial(_affn_kernel, H=H, W=W),
        out_shape=jax.ShapeDtypeStruct((N, D, HW), jnp.float32),
        grid_spec=pltpu.PrefetchScalarGridSpec(
            num_scalar_prefetch=0,
            grid=(N,),
            in_specs=in_specs,
            out_specs=pl.BlockSpec((1, D, HW), lambda b: (b, 0, 0)),
            # dwconv accumulators registerized -> no VMEM scratch needed.
        ),
        compiler_params=pltpu.CompilerParams(
            dimension_semantics=("parallel",),        # batch independent (v7x 2 TCs)
            vmem_limit_bytes=32 * 1024 * 1024),
    )(xm, mask_wl, mask_wr, *weights)

    return out.reshape(N, D, H, W)                    # already NCHW


# --------------------- parameter setup / pure-JAX reference -----------------


def make_torch_layout_params(key, dim, hidden):
    """Deterministic parameters in the PyTorch nn.Conv2d layout (bias=True)."""
    ks = jax.random.split(key, 10)
    n = lambda k, s, sc: (jax.random.normal(k, s, jnp.float32) * sc)
    return {
        "W_pi": n(ks[0], (2 * hidden, dim, 1, 1), 0.1), "b_pi": n(ks[1], (2 * hidden,), 0.05),
        "W_dw": n(ks[2], (2 * hidden, 1, 3, 3), 0.1),   "b_dw": n(ks[3], (2 * hidden,), 0.05),
        "W_po": n(ks[4], (dim, hidden, 1, 1), 0.1),     "b_po": n(ks[5], (dim,), 0.05),
        "W_mi": n(ks[6], (hidden, dim, 1, 1), 0.1),     "b_mi": n(ks[7], (hidden,), 0.05),
        "W_dm": n(ks[8], (hidden, 1, 3, 3), 0.1),       "b_dm": n(ks[9], (hidden,), 0.05),
    }


def to_kernel_params(tp, hidden):
    h = hidden
    dim = tp["W_pi"].shape[1]
    w_pi = tp["W_pi"][:, :, 0, 0]                     # (2h, dim): x path (both chunks)
    w_mi = tp["W_mi"][:, :, 0, 0]                     # (h, dim):  mask path
    # block-diagonal fused projection: rows [x1 | x2 | mask], cols [x chans | mask chans]
    w_proj = jnp.concatenate([
        jnp.concatenate([w_pi, jnp.zeros((2 * h, dim), jnp.float32)], axis=1),
        jnp.concatenate([jnp.zeros((h, dim), jnp.float32), w_mi], axis=1),
    ], axis=0)                                        # (3h, 2*dim)
    b_proj = jnp.concatenate([tp["b_pi"], tp["b_mi"]]).reshape(3 * h, 1)
    w_dw = jnp.concatenate([tp["W_dw"][:, 0], tp["W_dm"][:, 0]], axis=0).reshape(3 * h, 9)
    b_dw = jnp.concatenate([tp["b_dw"], tp["b_dm"]]).reshape(3 * h, 1)
    return {
        "w_proj": w_proj, "b_proj": b_proj,
        "w_dw": w_dw, "b_dw": b_dw,
        "w_out": tp["W_po"][:, :, 0, 0],              # (dim, h)
        "b_out": tp["b_po"].reshape(dim, 1),
    }


def reference_forward(x, mask, tp):
    """Pure-JAX (XLA conv) reference, mirroring the PyTorch forward exactly."""
    conv = jax.lax.conv_general_dilated

    def c1x1(inp, w, b):
        y = conv(inp, w, (1, 1), "VALID", dimension_numbers=("NCHW", "OIHW", "NCHW"))
        return y + b.reshape(1, -1, 1, 1)

    def cdw(inp, w, b):
        y = conv(inp, w, (1, 1), ((1, 1), (1, 1)),
                 dimension_numbers=("NCHW", "OIHW", "NCHW"),
                 feature_group_count=w.shape[0])
        return y + b.reshape(1, -1, 1, 1)

    gelu = lambda v: jax.nn.gelu(v, approximate=False)
    h = tp["W_mi"].shape[0]

    xx = c1x1(x, tp["W_pi"], tp["b_pi"])
    dw = cdw(xx, tp["W_dw"], tp["b_dw"])
    x1, x2 = dw[:, :h], dw[:, h:]
    mm = c1x1(mask, tp["W_mi"], tp["b_mi"])
    mm = cdw(mm, tp["W_dm"], tp["b_dm"])
    mm = gelu(mm) * x2
    xo = gelu(x1) * mm
    return c1x1(xo, tp["W_po"], tp["b_po"])


# ----------------------------------- main -----------------------------------


if __name__ == "__main__":
    N, dim, H, W = 2, 4, 16, 16
    ffn_expansion_factor = 2.0
    hidden = int(dim * ffn_expansion_factor)      # 8  (bias=True)

    key = jax.random.PRNGKey(0)
    kx, km, kp = jax.random.split(key, 3)
    x = jax.random.normal(kx, (N, dim, H, W), jnp.float32)
    mask = jax.random.normal(km, (N, dim, H, W), jnp.float32)

    torch_params = make_torch_layout_params(kp, dim, hidden)
    kparams = to_kernel_params(torch_params, hidden)

    out = attention_feedforward(x, mask, kparams)
    out = jax.block_until_ready(out)

    ref = jax.block_until_ready(reference_forward(x, mask, torch_params))
    np.testing.assert_allclose(np.asarray(out), np.asarray(ref), rtol=2e-4, atol=2e-4)

    print("KERNEL_OK")
</pallas_src>

<mosaic_0001>
module attributes {stable_mosaic.version = 11 : i64} {
  func.func @_affn_kernel(%arg0: i32, %arg1: memref<1x8x256xf32, #tpu.memory_space<vmem>>, %arg2: memref<1x256xf32, #tpu.memory_space<vmem>>, %arg3: memref<1x256xf32, #tpu.memory_space<vmem>>, %arg4: memref<24x8xf32, #tpu.memory_space<vmem>>, %arg5: memref<24x1xf32, #tpu.memory_space<vmem>>, %arg6: memref<24x9xf32, #tpu.memory_space<vmem>>, %arg7: memref<24x1xf32, #tpu.memory_space<vmem>>, %arg8: memref<4x8xf32, #tpu.memory_space<vmem>>, %arg9: memref<4x1xf32, #tpu.memory_space<vmem>>, %arg10: memref<1x4x256xf32, #tpu.memory_space<vmem>>) attributes {dimension_semantics = [#tpu.dimension_semantics<parallel>], iteration_bounds = array<i64: 2>, scalar_prefetch = 0 : i64, scratch_operands = 0 : i64, tpu.core_type = #tpu.core_type<tc>, window_params = [{transform_indices = @transform_0, window_bounds = array<i64: 1, 8, 256>}, {pipeline_mode = #tpu.pipeline_mode<synchronous>, transform_indices = @transform_1, window_bounds = array<i64: 1, 256>}, {pipeline_mode = #tpu.pipeline_mode<synchronous>, transform_indices = @transform_2, window_bounds = array<i64: 1, 256>}, {pipeline_mode = #tpu.pipeline_mode<synchronous>, transform_indices = @transform_3, window_bounds = array<i64: 24, 8>}, {pipeline_mode = #tpu.pipeline_mode<synchronous>, transform_indices = @transform_4, window_bounds = array<i64: 24, 1>}, {pipeline_mode = #tpu.pipeline_mode<synchronous>, transform_indices = @transform_5, window_bounds = array<i64: 24, 9>}, {pipeline_mode = #tpu.pipeline_mode<synchronous>, transform_indices = @transform_6, window_bounds = array<i64: 24, 1>}, {pipeline_mode = #tpu.pipeline_mode<synchronous>, transform_indices = @transform_7, window_bounds = array<i64: 4, 8>}, {pipeline_mode = #tpu.pipeline_mode<synchronous>, transform_indices = @transform_8, window_bounds = array<i64: 4, 1>}, {transform_indices = @transform_9, window_bounds = array<i64: 1, 4, 256>}]} {
    %c0 = arith.constant 0 : index
    %c0_0 = arith.constant 0 : index
    %c0_1 = arith.constant 0 : index
    %0 = vector.load %arg1[%c0, %c0_0, %c0_1] : memref<1x8x256xf32, #tpu.memory_space<vmem>>, vector<1x8x256xf32>
    %1 = vector.shape_cast %0 : vector<1x8x256xf32> to vector<8x256xf32>
    %c0_2 = arith.constant 0 : index
    %c0_3 = arith.constant 0 : index
    %2 = vector.load %arg4[%c0_2, %c0_3] : memref<24x8xf32, #tpu.memory_space<vmem>>, vector<24x8xf32>
    %cst = arith.constant dense<0.000000e+00> : vector<24x256xf32>
    %3 = tpu.matmul %2, %1, %cst {dimension_numbers = #tpu.dot_dimension_numbers<[1], [0], [0], [1], [0, 0, 1, 1], [], []>} : vector<24x8xf32>, vector<8x256xf32>, vector<24x256xf32> -> vector<24x256xf32>
    %c0_4 = arith.constant 0 : index
    %c0_5 = arith.constant 0 : index
    %4 = vector.load %arg5[%c0_4, %c0_5] : memref<24x1xf32, #tpu.memory_space<vmem>>, vector<24x1xf32>
    %5 = vector.broadcast %4 : vector<24x1xf32> to vector<24x256xf32>
    %6 = arith.addf %3, %5 : vector<24x256xf32>
    %c0_6 = arith.constant 0 : index
    %c0_7 = arith.constant 0 : index
    %7 = vector.load %arg6[%c0_6, %c0_7] : memref<24x9xf32, #tpu.memory_space<vmem>>, vector<24x9xf32>
    %c0_8 = arith.constant 0 : index
    %c0_9 = arith.constant 0 : index
    %8 = vector.load %arg2[%c0_8, %c0_9] : memref<1x256xf32, #tpu.memory_space<vmem>>, vector<1x256xf32>
    %c0_10 = arith.constant 0 : index
    %c0_11 = arith.constant 0 : index
    %9 = vector.load %arg3[%c0_10, %c0_11] : memref<1x256xf32, #tpu.memory_space<vmem>>, vector<1x256xf32>
    %cst_12 = arith.constant 0.000000e+00 : f32
    %10 = vector.broadcast %cst_12 : f32 to vector<24x1xf32>
    %11 = vector.extract_strided_slice %6 {offsets = [0, 0], sizes = [24, 255], strides = [1, 1]} : vector<24x256xf32> to vector<24x255xf32>
    %12 = tpu.concatenate %10, %11 in 1 : vector<24x1xf32>, vector<24x255xf32> -> vector<24x256xf32>
    %13 = vector.broadcast %8 : vector<1x256xf32> to vector<24x256xf32>
    %14 = arith.mulf %12, %13 : vector<24x256xf32>
    %15 = vector.extract_strided_slice %6 {offsets = [0, 1], sizes = [24, 255], strides = [1, 1]} : vector<24x256xf32> to vector<24x255xf32>
    %cst_13 = arith.constant 0.000000e+00 : f32
    %16 = vector.broadcast %cst_13 : f32 to vector<24x1xf32>
    %17 = tpu.concatenate %15, %16 in 1 : vector<24x255xf32>, vector<24x1xf32> -> vector<24x256xf32>
    %18 = vector.broadcast %9 : vector<1x256xf32> to vector<24x256xf32>
    %19 = arith.mulf %17, %18 : vector<24x256xf32>
    %20 = vector.extract_strided_slice %7 {offsets = [0, 0], sizes = [24, 1], strides = [1, 1]} : vector<24x9xf32> to vector<24x1xf32>
    %21 = vector.broadcast %20 : vector<24x1xf32> to vector<24x256xf32>
    %22 = arith.mulf %21, %14 : vector<24x256xf32>
    %23 = vector.extract_strided_slice %7 {offsets = [0, 1], sizes = [24, 1], strides = [1, 1]} : vector<24x9xf32> to vector<24x1xf32>
    %24 = vector.broadcast %23 : vector<24x1xf32> to vector<24x256xf32>
    %25 = arith.mulf %24, %6 : vector<24x256xf32>
    %26 = arith.addf %22, %25 : vector<24x256xf32>
    %27 = vector.extract_strided_slice %7 {offsets = [0, 2], sizes = [24, 1], strides = [1, 1]} : vector<24x9xf32> to vector<24x1xf32>
    %28 = vector.broadcast %27 : vector<24x1xf32> to vector<24x256xf32>
    %29 = arith.mulf %28, %19 : vector<24x256xf32>
    %30 = arith.addf %26, %29 : vector<24x256xf32>
    %31 = vector.extract_strided_slice %7 {offsets = [0, 3], sizes = [24, 1], strides = [1, 1]} : vector<24x9xf32> to vector<24x1xf32>
    %32 = vector.broadcast %31 : vector<24x1xf32> to vector<24x256xf32>
    %33 = arith.mulf %32, %14 : vector<24x256xf32>
    %34 = vector.extract_strided_slice %7 {offsets = [0, 4], sizes = [24, 1], strides = [1, 1]} : vector<24x9xf32> to vector<24x1xf32>
    %35 = vector.broadcast %34 : vector<24x1xf32> to vector<24x256xf32>
    %36 = arith.mulf %35, %6 : vector<24x256xf32>
    %37 = arith.addf %33, %36 : vector<24x256xf32>
    %38 = vector.extract_strided_slice %7 {offsets = [0, 5], sizes = [24, 1], strides = [1, 1]} : vector<24x9xf32> to vector<24x1xf32>
    %39 = vector.broadcast %38 : vector<24x1xf32> to vector<24x256xf32>
    %40 = arith.mulf %39, %19 : vector<24x256xf32>
    %41 = arith.addf %37, %40 : vector<24x256xf32>
    %42 = vector.extract_strided_slice %7 {offsets = [0, 6], sizes = [24, 1], strides = [1, 1]} : vector<24x9xf32> to vector<24x1xf32>
    %43 = vector.broadcast %42 : vector<24x1xf32> to vector<24x256xf32>
    %44 = arith.mulf %43, %14 : vector<24x256xf32>
    %45 = vector.extract_strided_slice %7 {offsets = [0, 7], sizes = [24, 1], strides = [1, 1]} : vector<24x9xf32> to vector<24x1xf32>
    %46 = vector.broadcast %45 : vector<24x1xf32> to vector<24x256xf32>
    %47 = arith.mulf %46, %6 : vector<24x256xf32>
    %48 = arith.addf %44, %47 : vector<24x256xf32>
    %49 = vector.extract_strided_slice %7 {offsets = [0, 8], sizes = [24, 1], strides = [1, 1]} : vector<24x9xf32> to vector<24x1xf32>
    %50 = vector.broadcast %49 : vector<24x1xf32> to vector<24x256xf32>
    %51 = arith.mulf %50, %19 : vector<24x256xf32>
    %52 = arith.addf %48, %51 : vector<24x256xf32>
    %cst_14 = arith.constant 0.000000e+00 : f32
    %53 = vector.broadcast %cst_14 : f32 to vector<24x16xf32>
    %54 = vector.extract_strided_slice %30 {offsets = [0, 0], sizes = [24, 240], strides = [1, 1]} : vector<24x256xf32> to vector<24x240xf32>
    %55 = tpu.concatenate %53, %54 in 1 : vector<24x16xf32>, vector<24x240xf32> -> vector<24x256xf32>
    %56 = arith.addf %41, %55 : vector<24x256xf32>
    %57 = vector.extract_strided_slice %52 {offsets = [0, 16], sizes = [24, 240], strides = [1, 1]} : vector<24x256xf32> to vector<24x240xf32>
    %cst_15 = arith.constant 0.000000e+00 : f32
    %58 = vector.broadcast %cst_15 : f32 to vector<24x16xf32>
    %59 = tpu.concatenate %57, %58 in 1 : vector<24x240xf32>, vector<24x16xf32> -> vector<24x256xf32>
    %60 = arith.addf %56, %59 : vector<24x256xf32>
    %c0_16 = arith.constant 0 : index
    %c0_17 = arith.constant 0 : index
    %61 = vector.load %arg7[%c0_16, %c0_17] : memref<24x1xf32, #tpu.memory_space<vmem>>, vector<24x1xf32>
    %62 = vector.broadcast %61 : vector<24x1xf32> to vector<24x256xf32>
    %63 = arith.addf %60, %62 : vector<24x256xf32>
    %64 = vector.extract_strided_slice %63 {offsets = [0, 0], sizes = [8, 256], strides = [1, 1]} : vector<24x256xf32> to vector<8x256xf32>
    %65 = vector.extract_strided_slice %63 {offsets = [8, 0], sizes = [8, 256], strides = [1, 1]} : vector<24x256xf32> to vector<8x256xf32>
    %66 = vector.extract_strided_slice %63 {offsets = [16, 0], sizes = [8, 256], strides = [1, 1]} : vector<24x256xf32> to vector<8x256xf32>
    %cst_18 = arith.constant 5.000000e-01 : f32
    %67 = vector.broadcast %cst_18 : f32 to vector<8x256xf32>
    %68 = arith.mulf %67, %64 : vector<8x256xf32>
    %cst_19 = arith.constant 0.707106769 : f32
    %69 = vector.broadcast %cst_19 : f32 to vector<8x256xf32>
    %70 = arith.mulf %64, %69 : vector<8x256xf32>
    %71 = math.erf %70 : vector<8x256xf32>
    %cst_20 = arith.constant 1.000000e+00 : f32
    %72 = vector.broadcast %cst_20 : f32 to vector<8x256xf32>
    %73 = arith.addf %72, %71 : vector<8x256xf32>
    %74 = arith.mulf %68, %73 : vector<8x256xf32>
    %cst_21 = arith.constant 5.000000e-01 : f32
    %75 = vector.broadcast %cst_21 : f32 to vector<8x256xf32>
    %76 = arith.mulf %75, %66 : vector<8x256xf32>
    %cst_22 = arith.constant 0.707106769 : f32
    %77 = vector.broadcast %cst_22 : f32 to vector<8x256xf32>
    %78 = arith.mulf %66, %77 : vector<8x256xf32>
    %79 = math.erf %78 : vector<8x256xf32>
    %cst_23 = arith.constant 1.000000e+00 : f32
    %80 = vector.broadcast %cst_23 : f32 to vector<8x256xf32>
    %81 = arith.addf %80, %79 : vector<8x256xf32>
    %82 = arith.mulf %76, %81 : vector<8x256xf32>
    %83 = arith.mulf %82, %65 : vector<8x256xf32>
    %84 = arith.mulf %74, %83 : vector<8x256xf32>
    %c0_24 = arith.constant 0 : index
    %c0_25 = arith.constant 0 : index
    %85 = vector.load %arg8[%c0_24, %c0_25] : memref<4x8xf32, #tpu.memory_space<vmem>>, vector<4x8xf32>
    %cst_26 = arith.constant dense<0.000000e+00> : vector<4x256xf32>
    %86 = tpu.matmul %85, %84, %cst_26 {dimension_numbers = #tpu.dot_dimension_numbers<[1], [0], [0], [1], [0, 0, 1, 1], [], []>} : vector<4x8xf32>, vector<8x256xf32>, vector<4x256xf32> -> vector<4x256xf32>
    %c0_27 = arith.constant 0 : index
    %c0_28 = arith.constant 0 : index
    %87 = vector.load %arg9[%c0_27, %c0_28] : memref<4x1xf32, #tpu.memory_space<vmem>>, vector<4x1xf32>
    %88 = vector.broadcast %87 : vector<4x1xf32> to vector<4x256xf32>
    %89 = arith.addf %86, %88 : vector<4x256xf32>
    %90 = vector.shape_cast %89 : vector<4x256xf32> to vector<1x4x256xf32>
    %c0_29 = arith.constant 0 : index
    %c0_30 = arith.constant 0 : index
    %c0_31 = arith.constant 0 : index
    %91 = vector.load %arg10[%c0_29, %c0_30, %c0_31] : memref<1x4x256xf32, #tpu.memory_space<vmem>>, vector<1x4x256xf32>
    tpu.vector_store %arg10[%c0_29, %c0_30, %c0_31], %90 {strides = array<i32>} : memref<1x4x256xf32, #tpu.memory_space<vmem>>, vector<1x4x256xf32>,
    return
  }
  func.func @transform_0(%arg0: i32) -> (i32, i32, i32) {
    %c0_i32 = arith.constant 0 : i32
    %c0_i32_0 = arith.constant 0 : i32
    %c0_i32_1 = arith.constant 0 : i32
    return %arg0, %c0_i32, %c0_i32_0 : i32, i32, i32
  }
  func.func @transform_1(%arg0: i32) -> (i32, i32) {
    %c0_i32 = arith.constant 0 : i32
    %c0_i32_0 = arith.constant 0 : i32
    %c0_i32_1 = arith.constant 0 : i32
    return %c0_i32, %c0_i32_0 : i32, i32
  }
  func.func @transform_2(%arg0: i32) -> (i32, i32) {
    %c0_i32 = arith.constant 0 : i32
    %c0_i32_0 = arith.constant 0 : i32
    %c0_i32_1 = arith.constant 0 : i32
    return %c0_i32, %c0_i32_0 : i32, i32
  }
  func.func @transform_3(%arg0: i32) -> (i32, i32) {
    %c0_i32 = arith.constant 0 : i32
    %c0_i32_0 = arith.constant 0 : i32
    %c0_i32_1 = arith.constant 0 : i32
    return %c0_i32, %c0_i32_0 : i32, i32
  }
  func.func @transform_4(%arg0: i32) -> (i32, i32) {
    %c0_i32 = arith.constant 0 : i32
    %c0_i32_0 = arith.constant 0 : i32
    %c0_i32_1 = arith.constant 0 : i32
    return %c0_i32, %c0_i32_0 : i32, i32
  }
  func.func @transform_5(%arg0: i32) -> (i32, i32) {
    %c0_i32 = arith.constant 0 : i32
    %c0_i32_0 = arith.constant 0 : i32
    %c0_i32_1 = arith.constant 0 : i32
    return %c0_i32, %c0_i32_0 : i32, i32
  }
  func.func @transform_6(%arg0: i32) -> (i32, i32) {
    %c0_i32 = arith.constant 0 : i32
    %c0_i32_0 = arith.constant 0 : i32
    %c0_i32_1 = arith.constant 0 : i32
    return %c0_i32, %c0_i32_0 : i32, i32
  }
  func.func @transform_7(%arg0: i32) -> (i32, i32) {
    %c0_i32 = arith.constant 0 : i32
    %c0_i32_0 = arith.constant 0 : i32
    %c0_i32_1 = arith.constant 0 : i32
    return %c0_i32, %c0_i32_0 : i32, i32
  }
  func.func @transform_8(%arg0: i32) -> (i32, i32) {
    %c0_i32 = arith.constant 0 : i32
    %c0_i32_0 = arith.constant 0 : i32
    %c0_i32_1 = arith.constant 0 : i32
    return %c0_i32, %c0_i32_0 : i32, i32
  }
  func.func @transform_9(%arg0: i32) -> (i32, i32, i32) {
    %c0_i32 = arith.constant 0 : i32
    %c0_i32_0 = arith.constant 0 : i32
    %c0_i32_1 = arith.constant 0 : i32
    return %arg0, %c0_i32, %c0_i32_0 : i32, i32, i32
  }
}

</mosaic_0001>

<llo_original>
// kernel: tpu_custom_call.1
$region0: #{tpu_custom_call.1}
  #allocation0 [shape = 'u32[]', space=smem, size = 0x4, offset = 0x4, fixed_abs, tag = 'smem constant byte address 0x4 - core index']
  #allocation1 [shape = 'u32[72,128]{1,0:T(1,128)}', space=vmem, size = 0x9000, scoped, tag = 'internal scratch']
  %s0 = inlined_call_operand.vmem [shape: f32[2,8,256], index: 0, kind: input, shape index: {}]
  %s1 = inlined_call_operand.vmem [shape: f32[1,256], index: 1, kind: input, shape index: {}]
  %s2 = inlined_call_operand.vmem [shape: f32[1,256], index: 2, kind: input, shape index: {}]
  %s3 = inlined_call_operand.vmem [shape: f32[24,8], index: 3, kind: input, shape index: {}]
  %s4 = inlined_call_operand.vmem [shape: f32[24,1], index: 4, kind: input, shape index: {}]
  %s5 = inlined_call_operand.vmem [shape: f32[24,9], index: 5, kind: input, shape index: {}]
  %s6 = inlined_call_operand.vmem [shape: f32[24,1], index: 6, kind: input, shape index: {}]
  %s7 = inlined_call_operand.vmem [shape: f32[4,8], index: 7, kind: input, shape index: {}]
  %s8 = inlined_call_operand.vmem [shape: f32[4,1], index: 8, kind: input, shape index: {}]
  %s9 = inlined_call_operand.hbm [shape: f32[2,4,256], index: 9, kind: output, shape index: {}]
  %s10 = sld [smem:[#allocation0]]
  $region69: #{tpu_custom_call.1} parent=0
    _
  %s12 = ssub.s32 1, %s10
  %s13 = scalar_select 0, %s12, %s10
  $region1: #{tpu_custom_call.1} parent=0
    #allocation2 [shape = 'u8[8192]{0}', space=vmem, size = 0x2000, scoped, tag = 'output window, operand 0']
    #allocation3 [shape = 's32[2]{0}', space=sflag, size = 0x8, scoped, tag = 'scoped memory for tpu_custom_call.1']
    %14 = vsyncpa [#allocation3], 0
    %s15 = scalar_lea.sflag [#allocation3], 1
    %16 = vsyncpa %s15, 0
    loop: start=0, step=1, limit=4
    $region2: #{tpu_custom_call.1} parent=1 // loop_pre_header
      _
    $region3: #{tpu_custom_call.1} parent=1 // loop_header
      %s18 = sphi 0, %s22
      %p19 = scmp.ge.s32.totalorder %s18, 4
      %s28 = sphi 0, %s30
      %s31 = sphi 0, %s28
      %s32 = sphi 0, %s31
      %s48 = sphi 0, %s32
      %s52 = sphi 0, %s52
      %s54 = sphi 0, %s52
      %s55 = sphi 0, %s54
      %s69 = sphi 0, %s55
      %s73 = sphi 0, %s73
      %s75 = sphi 0, %s73
      %s76 = sphi 0, %s75
      %s90 = sphi 0, %s76
      %s94 = sphi 0, %s94
      %s96 = sphi 0, %s94
      %s97 = sphi 0, %s96
      %s111 = sphi 0, %s97
      %s115 = sphi 0, %s115
      %s117 = sphi 0, %s115
      %s118 = sphi 0, %s117
      %s132 = sphi 0, %s118
      %s136 = sphi 0, %s136
      %s138 = sphi 0, %s136
      %s139 = sphi 0, %s138
      %s153 = sphi 0, %s139
      %s157 = sphi 0, %s157
      %s159 = sphi 0, %s157
      %s160 = sphi 0, %s159
      %s174 = sphi 0, %s160
      %s178 = sphi 0, %s178
      %s180 = sphi 0, %s178
      %s181 = sphi 0, %s180
      %s195 = sphi 0, %s181
      %s199 = sphi 0, %s199
      %s201 = sphi 0, %s199
      %s202 = sphi 0, %s201
      %s216 = sphi 0, %s202
      %s222 = sphi 0, %s224
      %s225 = sphi 0, %s222
      %s226 = sphi 0, %s225
      %s242 = sphi 0, %s226
    $region4: #{tpu_custom_call.1} parent=1 // loop_header_branch
      %21 = sbr.rel (%p19) target = $region8
    $region5: #{tpu_custom_call.1} parent=1 // loop_body
      %s23 = ssub.s32 %s18, 1
      %s24 = ssub.s32 %s18, 2
      %s25 = sadd.s32 %s18, 1
      %s26 = ssub.s32 %s18, %s25
      %p27 = scmp.eq.s32.totalorder %s26, 0
      %s29 = sadd.s32 %s28, 1
      %s30 = scalar_select %p27, %s28, %s29
      %p33 = pneg %p27
      %p34 = scmp.eq.s32.totalorder %s18, 1
      %p35 = por %p33, %p34
      %p36 = scmp.ne.s32.totalorder %s28, %s31
      %p37 = scmp.eq.s32.totalorder %s18, 0
      %p38 = por %p36, %p37
      %p39 = scmp.ne.s32.totalorder %s28, %s31
      %p40 = scmp.eq.s32.totalorder %s23, 1
      %p41 = por %p39, %p40
      %p42 = scmp.ne.s32.totalorder %s31, %s32
      %p43 = scmp.eq.s32.totalorder %s23, 0
      %p44 = por %p42, %p43
      %p45 = scmp.ne.s32.totalorder %s31, %s32
      %p46 = scmp.eq.s32.totalorder %s24, 1
      %p47 = por %p45, %p46
      %p49 = scmp.ne.s32.totalorder %s32, %s48
      %p50 = scmp.eq.s32.totalorder %s24, 0
      %p51 = por %p49, %p50
      %s53 = sadd.s32 %s52, 1
      %p56 = scmp.eq.s32.totalorder %s18, 1
      %p57 = scmp.ne.s32.totalorder %s52, %s54
      %p58 = scmp.eq.s32.totalorder %s18, 0
      %p59 = por %p57, %p58
      %p60 = scmp.ne.s32.totalorder %s52, %s54
      %p61 = scmp.eq.s32.totalorder %s23, 1
      %p62 = por %p60, %p61
      %p63 = scmp.ne.s32.totalorder %s54, %s55
      %p64 = scmp.eq.s32.totalorder %s23, 0
      %p65 = por %p63, %p64
      %p66 = scmp.ne.s32.totalorder %s54, %s55
      %p67 = scmp.eq.s32.totalorder %s24, 1
      %p68 = por %p66, %p67
      %p70 = scmp.ne.s32.totalorder %s55, %s69
      %p71 = scmp.eq.s32.totalorder %s24, 0
      %p72 = por %p70, %p71
      %s74 = sadd.s32 %s73, 1
      %p77 = scmp.eq.s32.totalorder %s18, 1
      %p78 = scmp.ne.s32.totalorder %s73, %s75
      %p79 = scmp.eq.s32.totalorder %s18, 0
      %p80 = por %p78, %p79
      %p81 = scmp.ne.s32.totalorder %s73, %s75
      %p82 = scmp.eq.s32.totalorder %s23, 1
      %p83 = por %p81, %p82
      %p84 = scmp.ne.s32.totalorder %s75, %s76
      %p85 = scmp.eq.s32.totalorder %s23, 0
      %p86 = por %p84, %p85
      %p87 = scmp.ne.s32.totalorder %s75, %s76
      %p88 = scmp.eq.s32.totalorder %s24, 1
      %p89 = por %p87, %p88
      %p91 = scmp.ne.s32.totalorder %s76, %s90
      %p92 = scmp.eq.s32.totalorder %s24, 0
      %p93 = por %p91, %p92
      %s95 = sadd.s32 %s94, 1
      %p98 = scmp.eq.s32.totalorder %s18, 1
      %p99 = scmp.ne.s32.totalorder %s94, %s96
      %p100 = scmp.eq.s32.totalorder %s18, 0
      %p101 = por %p99, %p100
      %p102 = scmp.ne.s32.totalorder %s94, %s96
      %p103 = scmp.eq.s32.totalorder %s23, 1
      %p104 = por %p102, %p103
      %p105 = scmp.ne.s32.totalorder %s96, %s97
      %p106 = scmp.eq.s32.totalorder %s23, 0
      %p107 = por %p105, %p106
      %p108 = scmp.ne.s32.totalorder %s96, %s97
      %p109 = scmp.eq.s32.totalorder %s24, 1
      %p110 = por %p108, %p109
      %p112 = scmp.ne.s32.totalorder %s97, %s111
      %p113 = scmp.eq.s32.totalorder %s24, 0
      %p114 = por %p112, %p113
      %s116 = sadd.s32 %s115, 1
      %p119 = scmp.eq.s32.totalorder %s18, 1
      %p120 = scmp.ne.s32.totalorder %s115, %s117
      %p121 = scmp.eq.s32.totalorder %s18, 0
      %p122 = por %p120, %p121
      %p123 = scmp.ne.s32.totalorder %s115, %s117
      %p124 = scmp.eq.s32.totalorder %s23, 1
      %p125 = por %p123, %p124
      %p126 = scmp.ne.s32.totalorder %s117, %s118
      %p127 = scmp.eq.s32.totalorder %s23, 0
      %p128 = por %p126, %p127
      %p129 = scmp.ne.s32.totalorder %s117, %s118
      %p130 = scmp.eq.s32.totalorder %s24, 1
      %p131 = por %p129, %p130
      %p133 = scmp.ne.s32.totalorder %s118, %s132
      %p134 = scmp.eq.s32.totalorder %s24, 0
      %p135 = por %p133, %p134
      %s137 = sadd.s32 %s136, 1
      %p140 = scmp.eq.s32.totalorder %s18, 1
      %p141 = scmp.ne.s32.totalorder %s136, %s138
      %p142 = scmp.eq.s32.totalorder %s18, 0
      %p143 = por %p141, %p142
      %p144 = scmp.ne.s32.totalorder %s136, %s138
      %p145 = scmp.eq.s32.totalorder %s23, 1
      %p146 = por %p144, %p145
      %p147 = scmp.ne.s32.totalorder %s138, %s139
      %p148 = scmp.eq.s32.totalorder %s23, 0
      %p149 = por %p147, %p148
      %p150 = scmp.ne.s32.totalorder %s138, %s139
      %p151 = scmp.eq.s32.totalorder %s24, 1
      %p152 = por %p150, %p151
      %p154 = scmp.ne.s32.totalorder %s139, %s153
      %p155 = scmp.eq.s32.totalorder %s24, 0
      %p156 = por %p154, %p155
      %s158 = sadd.s32 %s157, 1
      %p161 = scmp.eq.s32.totalorder %s18, 1
      %p162 = scmp.ne.s32.totalorder %s157, %s159
      %p163 = scmp.eq.s32.totalorder %s18, 0
      %p164 = por %p162, %p163
      %p165 = scmp.ne.s32.totalorder %s157, %s159
      %p166 = scmp.eq.s32.totalorder %s23, 1
      %p167 = por %p165, %p166
      %p168 = scmp.ne.s32.totalorder %s159, %s160
      %p169 = scmp.eq.s32.totalorder %s23, 0
      %p170 = por %p168, %p169
      %p171 = scmp.ne.s32.totalorder %s159, %s160
      %p172 = scmp.eq.s32.totalorder %s24, 1
      %p173 = por %p171, %p172
      %p175 = scmp.ne.s32.totalorder %s160, %s174
      %p176 = scmp.eq.s32.totalorder %s24, 0
      %p177 = por %p175, %p176
      %s179 = sadd.s32 %s178, 1
      %p182 = scmp.eq.s32.totalorder %s18, 1
      %p183 = scmp.ne.s32.totalorder %s178, %s180
      %p184 = scmp.eq.s32.totalorder %s18, 0
      %p185 = por %p183, %p184
      %p186 = scmp.ne.s32.totalorder %s178, %s180
      %p187 = scmp.eq.s32.totalorder %s23, 1
      %p188 = por %p186, %p187
      %p189 = scmp.ne.s32.totalorder %s180, %s181
      %p190 = scmp.eq.s32.totalorder %s23, 0
      %p191 = por %p189, %p190
      %p192 = scmp.ne.s32.totalorder %s180, %s181
      %p193 = scmp.eq.s32.totalorder %s24, 1
      %p194 = por %p192, %p193
      %p196 = scmp.ne.s32.totalorder %s181, %s195
      %p197 = scmp.eq.s32.totalorder %s24, 0
      %p198 = por %p196, %p197
      %s200 = sadd.s32 %s199, 1
      %p203 = scmp.eq.s32.totalorder %s18, 1
      %p204 = scmp.ne.s32.totalorder %s199, %s201
      %p205 = scmp.eq.s32.totalorder %s18, 0
      %p206 = por %p204, %p205
      %p207 = scmp.ne.s32.totalorder %s199, %s201
      %p208 = scmp.eq.s32.totalorder %s23, 1
      %p209 = por %p207, %p208
      %p210 = scmp.ne.s32.totalorder %s201, %s202
      %p211 = scmp.eq.s32.totalorder %s23, 0
      %p212 = por %p210, %p211
      %p213 = scmp.ne.s32.totalorder %s201, %s202
      %p214 = scmp.eq.s32.totalorder %s24, 1
      %p215 = por %p213, %p214
      %p217 = scmp.ne.s32.totalorder %s202, %s216
      %p218 = scmp.eq.s32.totalorder %s24, 0
      %p219 = por %p217, %p218
      %s220 = ssub.s32 %s18, %s25
      %p221 = scmp.eq.s32.totalorder %s220, 0
      %s223 = sadd.s32 %s222, 1
      %s224 = scalar_select %p221, %s222, %s223
      %p227 = pneg %p221
      %p228 = scmp.eq.s32.totalorder %s18, 1
      %p229 = por %p227, %p228
      %p230 = scmp.ne.s32.totalorder %s222, %s225
      %p231 = scmp.eq.s32.totalorder %s18, 0
      %p232 = por %p230, %p231
      %p233 = scmp.ne.s32.totalorder %s222, %s225
      %p234 = scmp.eq.s32.totalorder %s23, 1
      %p235 = por %p233, %p234
      %p236 = scmp.ne.s32.totalorder %s225, %s226
      %p237 = scmp.eq.s32.totalorder %s23, 0
      %p238 = por %p236, %p237
      %p239 = scmp.ne.s32.totalorder %s225, %s226
      %p240 = scmp.eq.s32.totalorder %s24, 1
      %p241 = por %p239, %p240
      %p243 = scmp.ne.s32.totalorder %s226, %s242
      %p244 = scmp.eq.s32.totalorder %s24, 0
      %p245 = por %p243, %p244
      %p246 = scmp.le.s32.totalorder 1, %s18
      %p247 = scmp.lt.s32.totalorder %s18, 3
      %p248 = pnand %p246, %p247
      %p249 = pneg %p248
      // Predicated region
      $region9: #{tpu_custom_call.1} parent=5 // pred_check
        _
      $region10: #{tpu_custom_call.1} parent=5 // pred_check_branch
        %251 = sbr.rel (%p248) target = $region12
      $region11: #{tpu_custom_call.1} parent=5 // pred_region
        %s252 = ssub.s32 %s18, 1
        // Predicated region
        $region13: #{tpu_custom_call.1} parent=11 // pred_check
          %p253 = pneg %p65
        $region14: #{tpu_custom_call.1} parent=11 // pred_check_branch
          %255 = sbr.rel (%p253) target = $region16
        $region15: #{tpu_custom_call.1} parent=11 // pred_region
          _
        $region16: #{tpu_custom_call.1} parent=11 // pred_fallthru
          _
        // Predicated region
        $region17: #{tpu_custom_call.1} parent=11 // pred_check
          %p256 = pneg %p86
        $region18: #{tpu_custom_call.1} parent=11 // pred_check_branch
          %258 = sbr.rel (%p256) target = $region20
        $region19: #{tpu_custom_call.1} parent=11 // pred_region
          _
        $region20: #{tpu_custom_call.1} parent=11 // pred_fallthru
          _
        // Predicated region
        $region21: #{tpu_custom_call.1} parent=11 // pred_check
          %p259 = pneg %p107
        $region22: #{tpu_custom_call.1} parent=11 // pred_check_branch
          %261 = sbr.rel (%p259) target = $region24
        $region23: #{tpu_custom_call.1} parent=11 // pred_region
          _
        $region24: #{tpu_custom_call.1} parent=11 // pred_fallthru
          _
        // Predicated region
        $region25: #{tpu_custom_call.1} parent=11 // pred_check
          %p262 = pneg %p128
        $region26: #{tpu_custom_call.1} parent=11 // pred_check_branch
          %264 = sbr.rel (%p262) target = $region28
        $region27: #{tpu_custom_call.1} parent=11 // pred_region
          _
        $region28: #{tpu_custom_call.1} parent=11 // pred_fallthru
          _
        // Predicated region
        $region29: #{tpu_custom_call.1} parent=11 // pred_check
          %p265 = pneg %p149
        $region30: #{tpu_custom_call.1} parent=11 // pred_check_branch
          %267 = sbr.rel (%p265) target = $region32
        $region31: #{tpu_custom_call.1} parent=11 // pred_region
          _
        $region32: #{tpu_custom_call.1} parent=11 // pred_fallthru
          _
        // Predicated region
        $region33: #{tpu_custom_call.1} parent=11 // pred_check
          %p268 = pneg %p170
        $region34: #{tpu_custom_call.1} parent=11 // pred_check_branch
          %270 = sbr.rel (%p268) target = $region36
        $region35: #{tpu_custom_call.1} parent=11 // pred_region
          _
        $region36: #{tpu_custom_call.1} parent=11 // pred_fallthru
          _
        // Predicated region
        $region37: #{tpu_custom_call.1} parent=11 // pred_check
          %p271 = pneg %p191
        $region38: #{tpu_custom_call.1} parent=11 // pred_check_branch
          %273 = sbr.rel (%p271) target = $region40
        $region39: #{tpu_custom_call.1} parent=11 // pred_region
          _
        $region40: #{tpu_custom_call.1} parent=11 // pred_fallthru
          _
        // Predicated region
        $region41: #{tpu_custom_call.1} parent=11 // pred_check
          %p274 = pneg %p212
        $region42: #{tpu_custom_call.1} parent=11 // pred_check_branch
          %276 = sbr.rel (%p274) target = $region44
        $region43: #{tpu_custom_call.1} parent=11 // pred_region
          _
        $region44: #{tpu_custom_call.1} parent=11 // pred_fallthru
          _
      $region12: #{tpu_custom_call.1} parent=5 // pred_fallthru
        _
      %p277 = scmp.lt.s32.totalorder %s18, 2
      // Predicated region
      $region45: #{tpu_custom_call.1} parent=5 // pred_check
        %p278 = pneg %p277
      $region46: #{tpu_custom_call.1} parent=5 // pred_check_branch
        %280 = sbr.rel (%p278) target = $region48
      $region47: #{tpu_custom_call.1} parent=5 // pred_region
        // Predicated region
        $region49: #{tpu_custom_call.1} parent=47 // pred_check
          %p281 = pneg %p38
        $region50: #{tpu_custom_call.1} parent=47 // pred_check_branch
          %283 = sbr.rel (%p281) target = $region52
        $region51: #{tpu_custom_call.1} parent=47 // pred_region
          %p284 = scmp.lt.s32.totalorder %s18, 1
          %s285 = scalar_select %p284, %s18, 1
          %s286 = smul.addr %s285, 2
          %s287 = smul.addr %s286, 8
          %s288 = scalar_lea.vmem %s0, %s287
        $region52: #{tpu_custom_call.1} parent=47 // pred_fallthru
          _
      $region48: #{tpu_custom_call.1} parent=5 // pred_fallthru
        _
      %p289 = scmp.le.s32.totalorder 1, %s18
      %p290 = scmp.lt.s32.totalorder %s18, 3
      %p291 = pnand %p289, %p290
      %p292 = pneg %p291
      // Predicated region
      $region53: #{tpu_custom_call.1} parent=5 // pred_check
        _
      $region54: #{tpu_custom_call.1} parent=5 // pred_check_branch
        %294 = sbr.rel (%p291) target = $region56
      $region55: #{tpu_custom_call.1} parent=5 // pred_region
        %s295 = ssub.s32 %s18, 1
        %p296 = scmp.lt.s32.totalorder %s23, 1
        %s297 = scalar_select %p296, %s23, 1
        %s298 = smul.addr %s297, 2
        %s299 = smul.addr %s298, 8
        %s300 = scalar_lea.vmem %s0, %s299
        %p301 = pneg %p44
        %p302 = pneg %p41
        %p303 = pneg %p65
        %p304 = pneg %p62
        %p305 = pneg %p86
        %p306 = pneg %p83
        %p307 = pneg %p107
        %p308 = pneg %p104
        %p309 = pneg %p128
        %p310 = pneg %p125
        %p311 = pneg %p149
        %p312 = pneg %p146
        %p313 = pneg %p170
        %p314 = pneg %p167
        %p315 = pneg %p191
        %p316 = pneg %p188
        %p317 = pneg %p212
        %p318 = pneg %p209
        %p319 = pneg %p238
        %p320 = pneg %p235
        %s321 = sand.u32 %s225, 1
        %s322 = scalar_lea.sflag [#allocation3], %s321
        %s323 = sand.u32 %s225, 1
        %s324 = smul.addr %s323, 8
        %s325 = scalar_lea.vmem [#allocation2], %s324
        %p326 = scmp.lt.s32.totalorder %s23, 1
        %s327 = scalar_select %p326, %s23, 1
        %s328 = smul.addr %s327, 2
        %s329 = smul.addr %s328, 8
        %s330 = scalar_lea.vmem %s0, %s329
        %v331 = vld [vmem:[%s330] sm:$0xff]
        %v332 = vld [vmem:[%s330 + $0x8] sm:$0xff]
        %v333 = vld [vmem:[%s3] sm:$0xff]
        %v334 = vld [vmem:[%s3 + $0x8] sm:$0xff]
        %v335 = vld [vmem:[%s3 + $0x10] sm:$0xff]
        %v336 = vld [vmem:[%s4] sm:$0xff]
        %v337 = vld [vmem:[%s4 + $0x8] sm:$0xff]
        %v338 = vld [vmem:[%s4 + $0x10] sm:$0xff]
        %340 = vset.pattern.permute.xlu0 0
        %341 = vperm.xlu0 %340, %v336
        %v342 = vpop.permute.xlu0 %341
        %345 = vset.pattern.permute.xlu0 0
        %346 = vperm.xlu0 %345, %v337
        %v347 = vpop.permute.xlu0 %346
        %350 = vset.pattern.permute.xlu0 0
        %351 = vperm.xlu0 %350, %v338
        %v352 = vpop.permute.xlu0 %351
        %vm354 = vcmask 64512
        %v356 = vsel %vm354, %v333, 0
        %v359 = vsel %vm354, %v334, 0
        %v362 = vsel %vm354, %v335, 0
        %364 = vmatpush.msra.mxu0 0.0
        %365 = vmatpush.msra.mxu0 0.0
        %366 = vmatpush.msra.mxu0 0.0
        %367 = vmatpush.msra.mxu0 0.0
        %368 = vmatpush.msra.mxu0 0.0
        %369 = vmatpush.msra.mxu0 0.0
        %370 = vmatpush.msra.mxu0 0.0
        %371 = vmatpush.msra.mxu0 0.0
        %372 = vmatpush.msra.mxu0 0.0
        %373 = vmatpush.msra.mxu0 0.0
        %374 = vmatpush.msra.mxu0 0.0
        %375 = vmatpush.msra.mxu0 0.0
        %376 = vmatpush.msra.mxu0 0.0
        %377 = vmatpush.msra.mxu0 0.0
        %378 = vmatpush.msra.mxu0 0.0
        %379 = vmatpush.msra.mxu0 %v331
        %380 = vmatmul.f32.gmra.mxu0 %v356
        %v381 = vpop.f32.mrf.mxu0
        %v382 = vadd.f32 %v342, %v381
        %383 = vmatmul.f32.gmra.mxu0 %v359
        %v384 = vpop.f32.mrf.mxu0
        %v385 = vadd.f32 %v347, %v384
        %386 = vmatmul.f32.gmra.mxu0 %v362
        %v387 = vpop.f32.mrf.mxu0
        %v388 = vadd.f32 %v352, %v387
        %389 = vdwg.mxu0
        %390 = vmatpush.msra.mxu0 0.0
        %391 = vmatpush.msra.mxu0 0.0
        %392 = vmatpush.msra.mxu0 0.0
        %393 = vmatpush.msra.mxu0 0.0
        %394 = vmatpush.msra.mxu0 0.0
        %395 = vmatpush.msra.mxu0 0.0
        %396 = vmatpush.msra.mxu0 0.0
        %397 = vmatpush.msra.mxu0 0.0
        %398 = vmatpush.msra.mxu0 0.0
        %399 = vmatpush.msra.mxu0 0.0
        %400 = vmatpush.msra.mxu0 0.0
        %401 = vmatpush.msra.mxu0 0.0
        %402 = vmatpush.msra.mxu0 0.0
        %403 = vmatpush.msra.mxu0 0.0
        %404 = vmatpush.msra.mxu0 0.0
        %405 = vmatpush.msra.mxu0 %v332
        %406 = vmatmul.f32.gmra.mxu0 %v356
        %v407 = vpop.f32.mrf.mxu0
        %v408 = vadd.f32 %v342, %v407
        %409 = vmatmul.f32.gmra.mxu0 %v359
        %v410 = vpop.f32.mrf.mxu0
        %v411 = vadd.f32 %v347, %v410
        %412 = vmatmul.f32.gmra.mxu0 %v362
        %v413 = vpop.f32.mrf.mxu0
        %v414 = vadd.f32 %v352, %v413
        %415 = vdwg.mxu0
        %v416 = vld [vmem:[%s5] sm:$0xff]
        %v417 = vld [vmem:[%s5 + $0x8] sm:$0xff]
        %v418 = vld [vmem:[%s5 + $0x10] sm:$0xff]
        %v419 = vld [vmem:[%s1] sm:$0x3]
        %v420 = vld [vmem:[%s2] sm:$0x3]
        %427 = vrot.lane.b32.xlu0 %v382, 1
        %v428 = vpop.permute.xlu0 %427
        %429 = vrot.lane.b32.xlu0 %v408, 1
        %v430 = vpop.permute.xlu0 %429
        %431 = vrot.lane.b32.xlu0 %v385, 1
        %v432 = vpop.permute.xlu0 %431
        %433 = vrot.lane.b32.xlu0 %v411, 1
        %v434 = vpop.permute.xlu0 %433
        %435 = vrot.lane.b32.xlu0 %v388, 1
        %v436 = vpop.permute.xlu0 %435
        %437 = vrot.lane.b32.xlu0 %v414, 1
        %v438 = vpop.permute.xlu0 %437
        %vm439 = vcmask 7168
        %v440 = vsel %vm439, %v428, %v430
        %v441 = vsel %vm439, %v432, %v434
        %v442 = vsel %vm439, %v436, %v438
        %v449 = vsel %vm439, 0.0, %v428
        %v450 = vsel %vm439, 0.0, %v432
        %v451 = vsel %vm439, 0.0, %v436
        %v453 = vperm.slane %v419, 0
        %v454 = vperm.slane %v419, 1
        %v457 = vmul.f32 %v449, %v453
        %v458 = vmul.f32 %v440, %v454
        %v459 = vmul.f32 %v450, %v453
        %v460 = vmul.f32 %v441, %v454
        %v461 = vmul.f32 %v451, %v453
        %v462 = vmul.f32 %v442, %v454
        %463 = vrot.lane.b32.xlu0 %v382, 127
        %v464 = vpop.permute.xlu0 %463
        %465 = vrot.lane.b32.xlu0 %v408, 127
        %v466 = vpop.permute.xlu0 %465
        %467 = vrot.lane.b32.xlu0 %v385, 127
        %v468 = vpop.permute.xlu0 %467
        %469 = vrot.lane.b32.xlu0 %v411, 127
        %v470 = vpop.permute.xlu0 %469
        %471 = vrot.lane.b32.xlu0 %v388, 127
        %v472 = vpop.permute.xlu0 %471
        %473 = vrot.lane.b32.xlu0 %v414, 127
        %v474 = vpop.permute.xlu0 %473
        %vm475 = vcmask 1039360
        %v476 = vsel %vm475, %v464, %v466
        %v477 = vsel %vm475, %v468, %v470
        %v478 = vsel %vm475, %v472, %v474
        %v485 = vsel %vm475, %v466, 0.0
        %v486 = vsel %vm475, %v470, 0.0
        %v487 = vsel %vm475, %v474, 0.0
        %v489 = vperm.slane %v420, 0
        %v490 = vperm.slane %v420, 1
        %v493 = vmul.f32 %v476, %v489
        %v494 = vmul.f32 %v485, %v490
        %v495 = vmul.f32 %v477, %v489
        %v496 = vmul.f32 %v486, %v490
        %v497 = vmul.f32 %v478, %v489
        %v498 = vmul.f32 %v487, %v490
        %500 = vset.pattern.permute.xlu0 0
        %501 = vperm.xlu0 %500, %v416
        %v502 = vpop.permute.xlu0 %501
        %505 = vset.pattern.permute.xlu0 0
        %506 = vperm.xlu0 %505, %v417
        %v507 = vpop.permute.xlu0 %506
        %510 = vset.pattern.permute.xlu0 0
        %511 = vperm.xlu0 %510, %v418
        %v512 = vpop.permute.xlu0 %511
        %v514 = vmul.f32 %v502, %v457
        %v515 = vmul.f32 %v502, %v458
        %v516 = vmul.f32 %v507, %v459
        %v517 = vmul.f32 %v507, %v460
        %v518 = vmul.f32 %v512, %v461
        %v519 = vmul.f32 %v512, %v462
        %520 = vset.pattern.permute.xlu0 1
        %521 = vperm.xlu0 %520, %v416
        %v522 = vpop.permute.xlu0 %521
        %524 = vset.pattern.permute.xlu0 1
        %525 = vperm.xlu0 %524, %v417
        %v526 = vpop.permute.xlu0 %525
        %528 = vset.pattern.permute.xlu0 1
        %529 = vperm.xlu0 %528, %v418
        %v530 = vpop.permute.xlu0 %529
        %v532 = vmul.f32 %v522, %v382
        %v533 = vmul.f32 %v522, %v408
        %v534 = vmul.f32 %v526, %v385
        %v535 = vmul.f32 %v526, %v411
        %v536 = vmul.f32 %v530, %v388
        %v537 = vmul.f32 %v530, %v414
        %v538 = vadd.f32 %v514, %v532
        %v539 = vadd.f32 %v515, %v533
        %v540 = vadd.f32 %v516, %v534
        %v541 = vadd.f32 %v517, %v535
        %v542 = vadd.f32 %v518, %v536
        %v543 = vadd.f32 %v519, %v537
        %544 = vset.pattern.permute.xlu0 2
        %545 = vperm.xlu0 %544, %v416
        %v546 = vpop.permute.xlu0 %545
        %548 = vset.pattern.permute.xlu0 2
        %549 = vperm.xlu0 %548, %v417
        %v550 = vpop.permute.xlu0 %549
        %552 = vset.pattern.permute.xlu0 2
        %553 = vperm.xlu0 %552, %v418
        %v554 = vpop.permute.xlu0 %553
        %v556 = vmul.f32 %v546, %v493
        %v557 = vmul.f32 %v546, %v494
        %v558 = vmul.f32 %v550, %v495
        %v559 = vmul.f32 %v550, %v496
        %v560 = vmul.f32 %v554, %v497
        %v561 = vmul.f32 %v554, %v498
        %v562 = vadd.f32 %v538, %v556
        %v563 = vadd.f32 %v539, %v557
        %v564 = vadd.f32 %v540, %v558
        %v565 = vadd.f32 %v541, %v559
        %v566 = vadd.f32 %v542, %v560
        %v567 = vadd.f32 %v543, %v561
        %568 = vset.pattern.permute.xlu0 3
        %569 = vperm.xlu0 %568, %v416
        %v570 = vpop.permute.xlu0 %569
        %572 = vset.pattern.permute.xlu0 3
        %573 = vperm.xlu0 %572, %v417
        %v574 = vpop.permute.xlu0 %573
        %576 = vset.pattern.permute.xlu0 3
        %577 = vperm.xlu0 %576, %v418
        %v578 = vpop.permute.xlu0 %577
        %v580 = vmul.f32 %v570, %v457
        %v581 = vmul.f32 %v570, %v458
        %v582 = vmul.f32 %v574, %v459
        %v583 = vmul.f32 %v574, %v460
        %v584 = vmul.f32 %v578, %v461
        %v585 = vmul.f32 %v578, %v462
        %586 = vset.pattern.permute.xlu0 4
        %587 = vperm.xlu0 %586, %v416
        %v588 = vpop.permute.xlu0 %587
        %590 = vset.pattern.permute.xlu0 4
        %591 = vperm.xlu0 %590, %v417
        %v592 = vpop.permute.xlu0 %591
        %594 = vset.pattern.permute.xlu0 4
        %595 = vperm.xlu0 %594, %v418
        %v596 = vpop.permute.xlu0 %595
        %v598 = vmul.f32 %v588, %v382
        %v599 = vmul.f32 %v588, %v408
        %v600 = vmul.f32 %v592, %v385
        %v601 = vmul.f32 %v592, %v411
        %v602 = vmul.f32 %v596, %v388
        %v603 = vmul.f32 %v596, %v414
        %v604 = vadd.f32 %v580, %v598
        %v605 = vadd.f32 %v581, %v599
        %v606 = vadd.f32 %v582, %v600
        %v607 = vadd.f32 %v583, %v601
        %v608 = vadd.f32 %v584, %v602
        %v609 = vadd.f32 %v585, %v603
        %610 = vset.pattern.permute.xlu0 5
        %611 = vperm.xlu0 %610, %v416
        %v612 = vpop.permute.xlu0 %611
        %614 = vset.pattern.permute.xlu0 5
        %615 = vperm.xlu0 %614, %v417
        %v616 = vpop.permute.xlu0 %615
        %618 = vset.pattern.permute.xlu0 5
        %619 = vperm.xlu0 %618, %v418
        %v620 = vpop.permute.xlu0 %619
        %v622 = vmul.f32 %v612, %v493
        %v623 = vmul.f32 %v612, %v494
        %v624 = vmul.f32 %v616, %v495
        %v625 = vmul.f32 %v616, %v496
        %v626 = vmul.f32 %v620, %v497
        %v627 = vmul.f32 %v620, %v498
        %v628 = vadd.f32 %v604, %v622
        %v629 = vadd.f32 %v605, %v623
        %v630 = vadd.f32 %v606, %v624
        %v631 = vadd.f32 %v607, %v625
        %v632 = vadd.f32 %v608, %v626
        %v633 = vadd.f32 %v609, %v627
        %634 = vset.pattern.permute.xlu0 6
        %635 = vperm.xlu0 %634, %v416
        %v636 = vpop.permute.xlu0 %635
        %638 = vset.pattern.permute.xlu0 6
        %639 = vperm.xlu0 %638, %v417
        %v640 = vpop.permute.xlu0 %639
        %642 = vset.pattern.permute.xlu0 6
        %643 = vperm.xlu0 %642, %v418
        %v644 = vpop.permute.xlu0 %643
        %v646 = vmul.f32 %v636, %v457
        %v647 = vmul.f32 %v636, %v458
        %v648 = vmul.f32 %v640, %v459
        %v649 = vmul.f32 %v640, %v460
        %v650 = vmul.f32 %v644, %v461
        %v651 = vmul.f32 %v644, %v462
        %652 = vset.pattern.permute.xlu0 7
        %653 = vperm.xlu0 %652, %v416
        %v654 = vpop.permute.xlu0 %653
        %656 = vset.pattern.permute.xlu0 7
        %657 = vperm.xlu0 %656, %v417
        %v658 = vpop.permute.xlu0 %657
        %660 = vset.pattern.permute.xlu0 7
        %661 = vperm.xlu0 %660, %v418
        %v662 = vpop.permute.xlu0 %661
        %v664 = vmul.f32 %v654, %v382
        %v665 = vmul.f32 %v654, %v408
        %v666 = vmul.f32 %v658, %v385
        %v667 = vmul.f32 %v658, %v411
        %v668 = vmul.f32 %v662, %v388
        %v669 = vmul.f32 %v662, %v414
        %v670 = vadd.f32 %v646, %v664
        %v671 = vadd.f32 %v647, %v665
        %v672 = vadd.f32 %v648, %v666
        %v673 = vadd.f32 %v649, %v667
        %v674 = vadd.f32 %v650, %v668
        %v675 = vadd.f32 %v651, %v669
        %676 = vset.pattern.permute.xlu0 8
        %677 = vperm.xlu0 %676, %v416
        %v678 = vpop.permute.xlu0 %677
        %680 = vset.pattern.permute.xlu0 8
        %681 = vperm.xlu0 %680, %v417
        %v682 = vpop.permute.xlu0 %681
        %684 = vset.pattern.permute.xlu0 8
        %685 = vperm.xlu0 %684, %v418
        %v686 = vpop.permute.xlu0 %685
        %v688 = vmul.f32 %v678, %v493
        %v689 = vmul.f32 %v678, %v494
        %v690 = vmul.f32 %v682, %v495
        %v691 = vmul.f32 %v682, %v496
        %v692 = vmul.f32 %v686, %v497
        %v693 = vmul.f32 %v686, %v498
        %v694 = vadd.f32 %v670, %v688
        %v695 = vadd.f32 %v671, %v689
        %v696 = vadd.f32 %v672, %v690
        %v697 = vadd.f32 %v673, %v691
        %v698 = vadd.f32 %v674, %v692
        %v699 = vadd.f32 %v675, %v693
        %706 = vrot.lane.b32.xlu0 %v562, 16
        %v707 = vpop.permute.xlu0 %706
        %708 = vrot.lane.b32.xlu0 %v563, 16
        %v709 = vpop.permute.xlu0 %708
        %710 = vrot.lane.b32.xlu0 %v564, 16
        %v711 = vpop.permute.xlu0 %710
        %712 = vrot.lane.b32.xlu0 %v565, 16
        %v713 = vpop.permute.xlu0 %712
        %714 = vrot.lane.b32.xlu0 %v566, 16
        %v715 = vpop.permute.xlu0 %714
        %716 = vrot.lane.b32.xlu0 %v567, 16
        %v717 = vpop.permute.xlu0 %716
        %vm718 = vcmask 130048
        %v719 = vsel %vm718, %v707, %v709
        %v720 = vsel %vm718, %v711, %v713
        %v721 = vsel %vm718, %v715, %v717
        %v728 = vsel %vm718, 0.0, %v707
        %v729 = vsel %vm718, 0.0, %v711
        %v730 = vsel %vm718, 0.0, %v715
        %v731 = vadd.f32 %v628, %v728
        %v732 = vadd.f32 %v629, %v719
        %v733 = vadd.f32 %v630, %v729
        %v734 = vadd.f32 %v631, %v720
        %v735 = vadd.f32 %v632, %v730
        %v736 = vadd.f32 %v633, %v721
        %743 = vrot.lane.b32.xlu0 %v694, 112
        %v744 = vpop.permute.xlu0 %743
        %745 = vrot.lane.b32.xlu0 %v695, 112
        %v746 = vpop.permute.xlu0 %745
        %747 = vrot.lane.b32.xlu0 %v696, 112
        %v748 = vpop.permute.xlu0 %747
        %749 = vrot.lane.b32.xlu0 %v697, 112
        %v750 = vpop.permute.xlu0 %749
        %751 = vrot.lane.b32.xlu0 %v698, 112
        %v752 = vpop.permute.xlu0 %751
        %753 = vrot.lane.b32.xlu0 %v699, 112
        %v754 = vpop.permute.xlu0 %753
        %vm755 = vcmask 916480
        %v756 = vsel %vm755, %v744, %v746
        %v757 = vsel %vm755, %v748, %v750
        %v758 = vsel %vm755, %v752, %v754
        %v765 = vsel %vm755, %v746, 0.0
        %v766 = vsel %vm755, %v750, 0.0
        %v767 = vsel %vm755, %v754, 0.0
        %v768 = vadd.f32 %v731, %v756
        %v769 = vadd.f32 %v732, %v765
        %v770 = vadd.f32 %v733, %v757
        %v771 = vadd.f32 %v734, %v766
        %v772 = vadd.f32 %v735, %v758
        %v773 = vadd.f32 %v736, %v767
        %v774 = vld [vmem:[%s6] sm:$0xff]
        %v775 = vld [vmem:[%s6 + $0x8] sm:$0xff]
        %v776 = vld [vmem:[%s6 + $0x10] sm:$0xff]
        %778 = vset.pattern.permute.xlu0 0
        %779 = vperm.xlu0 %778, %v774
        %v780 = vpop.permute.xlu0 %779
        %783 = vset.pattern.permute.xlu0 0
        %784 = vperm.xlu0 %783, %v775
        %v785 = vpop.permute.xlu0 %784
        %788 = vset.pattern.permute.xlu0 0
        %789 = vperm.xlu0 %788, %v776
        %v790 = vpop.permute.xlu0 %789
        %v792 = vadd.f32 %v768, %v780
        %v793 = vadd.f32 %v769, %v780
        %v794 = vadd.f32 %v770, %v785
        %v795 = vadd.f32 %v771, %v785
        %v796 = vadd.f32 %v772, %v790
        %v797 = vadd.f32 %v773, %v790
        %v798 = vmul.f32 %v792, 0.5
        %v799 = vmul.f32 %v793, 0.5
        %v800 = vmul.f32 %v792, 0.70710677
        %v801 = vmul.f32 %v793, 0.70710677
        %v802 = vmul.f32 %v800, %v800
        %v803 = vmin.f32 16.0, %v802
        %v804 = vmul.f32 %v803, 2.1237322e-06
        %v805 = vadd.f32 %v804, 0.00028619796
        %v806 = vmul.f32 %v803, %v805
        %v807 = vadd.f32 %v806, 0.0036580483
        %v808 = vmul.f32 %v803, %v807
        %v809 = vadd.f32 %v808, 0.05243302
        %v810 = vmul.f32 %v803, %v809
        %v811 = vadd.f32 %v810, 0.18741608
        %v812 = vmul.f32 %v803, %v811
        %v813 = vadd.f32 %v812, 1.1283791
        %v814 = vmul.f32 %v800, %v813
        %v815 = vmul.f32 %v803, 3.8918573e-05
        %v816 = vadd.f32 %v815, 0.001143296
        %v817 = vmul.f32 %v803, %v816
        %v818 = vadd.f32 %v817, 0.014752088
        %v819 = vmul.f32 %v803, %v818
        %v820 = vadd.f32 %v819, 0.112945676
        %v821 = vmul.f32 %v803, %v820
        %v822 = vadd.f32 %v821, 0.4994258
        %v823 = vmul.f32 %v803, %v822
        %v824 = vadd.f32 %v823, 1.0
        %v825 = vrcp.pop %v824
        %v826 = vmul.f32 %v824, %v825
        %v827 = vsub.f32 1.0, %v826
        %v828 = vmul.f32 %v825, %v827
        %v829 = vadd.f32 %v825, %v828
        %vm830 = vweird.f32 %v824
        %vm831 = vweird.f32 %v825
        %vm832 = vmor %vm830, %vm831
        %v833 = vsel %vm832, %v825, %v829
        %v834 = vand.u32 2147483647, %v824
        %vm835 = vcmp.eq.f32.partialorder %v834, 8.507059e+37
        %v836 = vand.u32 %v824, 2147483648
        %v837 = vor.u32 1.1754944e-38, %v836
        %v838 = vsel %vm835, %v837, %v833
        %v839 = vmul.f32 %v814, %v838
        %v840 = vmin.f32 %v839, 1.0
        %v841 = vmax.f32 %v840, -1.0
        %v842 = vmul.f32 %v801, %v801
        %v843 = vmin.f32 16.0, %v842
        %v844 = vmul.f32 %v843, 2.1237322e-06
        %v845 = vadd.f32 %v844, 0.00028619796
        %v846 = vmul.f32 %v843, %v845
        %v847 = vadd.f32 %v846, 0.0036580483
        %v848 = vmul.f32 %v843, %v847
        %v849 = vadd.f32 %v848, 0.05243302
        %v850 = vmul.f32 %v843, %v849
        %v851 = vadd.f32 %v850, 0.18741608
        %v852 = vmul.f32 %v843, %v851
        %v853 = vadd.f32 %v852, 1.1283791
        %v854 = vmul.f32 %v801, %v853
        %v855 = vmul.f32 %v843, 3.8918573e-05
        %v856 = vadd.f32 %v855, 0.001143296
        %v857 = vmul.f32 %v843, %v856
        %v858 = vadd.f32 %v857, 0.014752088
        %v859 = vmul.f32 %v843, %v858
        %v860 = vadd.f32 %v859, 0.112945676
        %v861 = vmul.f32 %v843, %v860
        %v862 = vadd.f32 %v861, 0.4994258
        %v863 = vmul.f32 %v843, %v862
        %v864 = vadd.f32 %v863, 1.0
        %v865 = vrcp.pop %v864
        %v866 = vmul.f32 %v864, %v865
        %v867 = vsub.f32 1.0, %v866
        %v868 = vmul.f32 %v865, %v867
        %v869 = vadd.f32 %v865, %v868
        %vm870 = vweird.f32 %v864
        %vm871 = vweird.f32 %v865
        %vm872 = vmor %vm870, %vm871
        %v873 = vsel %vm872, %v865, %v869
        %v874 = vand.u32 2147483647, %v864
        %vm875 = vcmp.eq.f32.partialorder %v874, 8.507059e+37
        %v876 = vand.u32 %v864, 2147483648
        %v877 = vor.u32 1.1754944e-38, %v876
        %v878 = vsel %vm875, %v877, %v873
        %v879 = vmul.f32 %v854, %v878
        %v880 = vmin.f32 %v879, 1.0
        %v881 = vmax.f32 %v880, -1.0
        %v882 = vadd.f32 %v841, 1.0
        %v883 = vadd.f32 %v881, 1.0
        %v884 = vmul.f32 %v798, %v882
        %v885 = vmul.f32 %v799, %v883
        %v886 = vmul.f32 %v796, 0.5
        %v887 = vmul.f32 %v797, 0.5
        %v888 = vmul.f32 %v796, 0.70710677
        %v889 = vmul.f32 %v797, 0.70710677
        %v890 = vmul.f32 %v888, %v888
        %v891 = vmin.f32 16.0, %v890
        %v892 = vmul.f32 %v891, 2.1237322e-06
        %v893 = vadd.f32 %v892, 0.00028619796
        %v894 = vmul.f32 %v891, %v893
        %v895 = vadd.f32 %v894, 0.0036580483
        %v896 = vmul.f32 %v891, %v895
        %v897 = vadd.f32 %v896, 0.05243302
        %v898 = vmul.f32 %v891, %v897
        %v899 = vadd.f32 %v898, 0.18741608
        %v900 = vmul.f32 %v891, %v899
        %v901 = vadd.f32 %v900, 1.1283791
        %v902 = vmul.f32 %v888, %v901
        %v903 = vmul.f32 %v891, 3.8918573e-05
        %v904 = vadd.f32 %v903, 0.001143296
        %v905 = vmul.f32 %v891, %v904
        %v906 = vadd.f32 %v905, 0.014752088
        %v907 = vmul.f32 %v891, %v906
        %v908 = vadd.f32 %v907, 0.112945676
        %v909 = vmul.f32 %v891, %v908
        %v910 = vadd.f32 %v909, 0.4994258
        %v911 = vmul.f32 %v891, %v910
        %v912 = vadd.f32 %v911, 1.0
        %v913 = vrcp.pop %v912
        %v914 = vmul.f32 %v912, %v913
        %v915 = vsub.f32 1.0, %v914
        %v916 = vmul.f32 %v913, %v915
        %v917 = vadd.f32 %v913, %v916
        %vm918 = vweird.f32 %v912
        %vm919 = vweird.f32 %v913
        %vm920 = vmor %vm918, %vm919
        %v921 = vsel %vm920, %v913, %v917
        %v922 = vand.u32 2147483647, %v912
        %vm923 = vcmp.eq.f32.partialorder %v922, 8.507059e+37
        %v924 = vand.u32 %v912, 2147483648
        %v925 = vor.u32 1.1754944e-38, %v924
        %v926 = vsel %vm923, %v925, %v921
        %v927 = vmul.f32 %v902, %v926
        %v928 = vmin.f32 %v927, 1.0
        %v929 = vmax.f32 %v928, -1.0
        %v930 = vmul.f32 %v889, %v889
        %v931 = vmin.f32 16.0, %v930
        %v932 = vmul.f32 %v931, 2.1237322e-06
        %v933 = vadd.f32 %v932, 0.00028619796
        %v934 = vmul.f32 %v931, %v933
        %v935 = vadd.f32 %v934, 0.0036580483
        %v936 = vmul.f32 %v931, %v935
        %v937 = vadd.f32 %v936, 0.05243302
        %v938 = vmul.f32 %v931, %v937
        %v939 = vadd.f32 %v938, 0.18741608
        %v940 = vmul.f32 %v931, %v939
        %v941 = vadd.f32 %v940, 1.1283791
        %v942 = vmul.f32 %v889, %v941
        %v943 = vmul.f32 %v931, 3.8918573e-05
        %v944 = vadd.f32 %v943, 0.001143296
        %v945 = vmul.f32 %v931, %v944
        %v946 = vadd.f32 %v945, 0.014752088
        %v947 = vmul.f32 %v931, %v946
        %v948 = vadd.f32 %v947, 0.112945676
        %v949 = vmul.f32 %v931, %v948
        %v950 = vadd.f32 %v949, 0.4994258
        %v951 = vmul.f32 %v931, %v950
        %v952 = vadd.f32 %v951, 1.0
        %v953 = vrcp.pop %v952
        %v954 = vmul.f32 %v952, %v953
        %v955 = vsub.f32 1.0, %v954
        %v956 = vmul.f32 %v953, %v955
        %v957 = vadd.f32 %v953, %v956
        %vm958 = vweird.f32 %v952
        %vm959 = vweird.f32 %v953
        %vm960 = vmor %vm958, %vm959
        %v961 = vsel %vm960, %v953, %v957
        %v962 = vand.u32 2147483647, %v952
        %vm963 = vcmp.eq.f32.partialorder %v962, 8.507059e+37
        %v964 = vand.u32 %v952, 2147483648
        %v965 = vor.u32 1.1754944e-38, %v964
        %v966 = vsel %vm963, %v965, %v961
        %v967 = vmul.f32 %v942, %v966
        %v968 = vmin.f32 %v967, 1.0
        %v969 = vmax.f32 %v968, -1.0
        %v970 = vadd.f32 %v929, 1.0
        %v971 = vadd.f32 %v969, 1.0
        %v972 = vmul.f32 %v886, %v970
        %v973 = vmul.f32 %v887, %v971
        %v974 = vmul.f32 %v972, %v794
        %v975 = vmul.f32 %v973, %v795
        %v976 = vmul.f32 %v884, %v974
        %v977 = vmul.f32 %v885, %v975
        %v978 = vld [vmem:[%s7] sm:$0xf]
        %v979 = vld [vmem:[%s8] sm:$0xf]
        %981 = vset.pattern.permute.xlu0 0
        %982 = vperm.xlu0 %981, %v979
        %v983 = vpop.permute.xlu0 %982
        %v986 = vsel %vm354, %v978, 0
        %988 = vmatpush.msra.mxu0 0.0
        %989 = vmatpush.msra.mxu0 0.0
        %990 = vmatpush.msra.mxu0 0.0
        %991 = vmatpush.msra.mxu0 0.0
        %992 = vmatpush.msra.mxu0 0.0
        %993 = vmatpush.msra.mxu0 0.0
        %994 = vmatpush.msra.mxu0 0.0
        %995 = vmatpush.msra.mxu0 0.0
        %996 = vmatpush.msra.mxu0 0.0
        %997 = vmatpush.msra.mxu0 0.0
        %998 = vmatpush.msra.mxu0 0.0
        %999 = vmatpush.msra.mxu0 0.0
        %1000 = vmatpush.msra.mxu0 0.0
        %1001 = vmatpush.msra.mxu0 0.0
        %1002 = vmatpush.msra.mxu0 0.0
        %1003 = vmatpush.msra.mxu0 %v976
        %1004 = vmatmul.f32.gmra.mxu0 %v986
        %v1005 = vpop.f32.mrf.mxu0
        %v1006 = vadd.f32 %v983, %v1005
        %1007 = vdwg.mxu0
        %1008 = vmatpush.msra.mxu0 0.0
        %1009 = vmatpush.msra.mxu0 0.0
        %1010 = vmatpush.msra.mxu0 0.0
        %1011 = vmatpush.msra.mxu0 0.0
        %1012 = vmatpush.msra.mxu0 0.0
        %1013 = vmatpush.msra.mxu0 0.0
        %1014 = vmatpush.msra.mxu0 0.0
        %1015 = vmatpush.msra.mxu0 0.0
        %1016 = vmatpush.msra.mxu0 0.0
        %1017 = vmatpush.msra.mxu0 0.0
        %1018 = vmatpush.msra.mxu0 0.0
        %1019 = vmatpush.msra.mxu0 0.0
        %1020 = vmatpush.msra.mxu0 0.0
        %1021 = vmatpush.msra.mxu0 0.0
        %1022 = vmatpush.msra.mxu0 0.0
        %1023 = vmatpush.msra.mxu0 %v977
        %1024 = vmatmul.f32.gmra.mxu0 %v986
        %v1025 = vpop.f32.mrf.mxu0
        %v1026 = vadd.f32 %v983, %v1025
        %1027 = vdwg.mxu0
        %v1030 = vrot.slane %v1026, 4
        %vm1031 = vcmask 1043456
        %v1032 = vsel %vm1031, %v1006, %v1030
        %1034 = vst [vmem:[%s325] sm:$0xff] %v1032
        %s1035 = sand.u32 %s225, 1
        %s1036 = scalar_lea.sflag [#allocation3], %s1035
        %s1037 = sand.u32 %s225, 1
        %s1038 = smul.addr %s1037, 8
        %s1039 = scalar_lea.vmem [#allocation2], %s1038
        // Predicated region
        $region57: #{tpu_custom_call.1} parent=55 // pred_check
          %p1040 = pneg %p235
        $region58: #{tpu_custom_call.1} parent=55 // pred_check_branch
          %1042 = sbr.rel (%p1040) target = $region60
        $region59: #{tpu_custom_call.1} parent=55 // pred_region
          %1044 = vsyncadd %s1036, 0
          %s1045 = smul.addr %s23, 2
          %s1046 = smul.addr %s1045, 4
          %s1047 = scalar_lea.hbm %s9, %s1046
          %s1049 = sshll.u32 %s1039, 4
          %s1050 = int_to_ptr.vmem [resolvable:$true] %s1049
          %s1051 = sshll.u32 %s1047, 4
          %s1052 = int_to_ptr.hbm [resolvable:$true] %s1051
          %1054 = dma.vmem_to_hbm [thread:$0]  %s1050, 128, %s1052, %s1036
        $region60: #{tpu_custom_call.1} parent=55 // pred_fallthru
          _
      $region56: #{tpu_custom_call.1} parent=5 // pred_fallthru
        _
      %p1055 = scmp.le.s32.totalorder 2, %s18
      // Predicated region
      $region61: #{tpu_custom_call.1} parent=5 // pred_check
        %p1056 = pneg %p1055
      $region62: #{tpu_custom_call.1} parent=5 // pred_check_branch
        %1058 = sbr.rel (%p1056) target = $region64
      $region63: #{tpu_custom_call.1} parent=5 // pred_region
        %s1059 = ssub.s32 %s18, 2
        // Predicated region
        $region65: #{tpu_custom_call.1} parent=63 // pred_check
          %p1060 = pneg %p241
        $region66: #{tpu_custom_call.1} parent=63 // pred_check_branch
          %1062 = sbr.rel (%p1060) target = $region68
        $region67: #{tpu_custom_call.1} parent=63 // pred_region
          %s1063 = sand.u32 %s226, 1
          %s1064 = scalar_lea.sflag [#allocation3], %s1063
          %s1065 = sand.u32 %s226, 1
          %s1066 = smul.addr %s1065, 8
          %s1067 = scalar_lea.vmem [#allocation2], %s1066
          %1069 = dma.done %s1064, 128
        $region68: #{tpu_custom_call.1} parent=63 // pred_fallthru
          _
      $region64: #{tpu_custom_call.1} parent=5 // pred_fallthru
        _
    $region6: #{tpu_custom_call.1} parent=1 // loop_footer
      %s22 = sadd.s32 1, %s18
    $region7: #{tpu_custom_call.1} parent=1 // loop_footer_branch
      %17 = sbr.rel target = $region3
    $region8: #{tpu_custom_call.1} parent=1 // loop_exit
      _
    %1070 = vsyncpa [#allocation3], 1
    %s1071 = scalar_lea.sflag [#allocation3], 1
    %1072 = vsyncpa %s1071, 1

</llo_original>
